<compile_context>
chip_gen: v7x
topology: tpu7x:2x2x1
jax: 0.10.0
libtpu: 0.0.40
codegen_flags: <defaults>
</compile_context>

<pallas_src>
import functools

import jax
import jax.numpy as jnp
from jax.experimental import pallas as pl
from jax.experimental.pallas import tpu as pltpu


def _round_up(n, m):
    return ((n + m - 1) // m) * m


def _silu_f32(x):
    return x * jax.nn.sigmoid(x)


def mlp_kernel(x_ref, wu_ref, wg_ref, wd_ref, o_ref):
    """Fused MLP: silu(silu(x @ Wu) @ Wg) @ Wd for one row tile.

    Operands enter the MXU in their stored (bf16 or f32) dtype; accumulation
    is f32.  SiLU is applied in f32, then cast back to the compute dtype so
    MXU inputs stay narrow.
    """
    cdt = x_ref.dtype
    h = jnp.dot(x_ref[...], wu_ref[...], preferred_element_type=jnp.float32)
    h = _silu_f32(h).astype(cdt)
    g = jnp.dot(h, wg_ref[...], preferred_element_type=jnp.float32)
    g = _silu_f32(g).astype(cdt)
    o = jnp.dot(g, wd_ref[...], preferred_element_type=jnp.float32)
    o_ref[...] = o.astype(o_ref.dtype)


def _weight_spec(shape):
    """Resident-weight BlockSpec: constant index_map, single-buffered.

    pipeline_mode=pl.Buffered(1) halves the weight VMEM footprint (nothing to
    double-buffer when the block index never changes).  Fall back to the
    default spec if this knob is unavailable in the running JAX.
    """
    try:
        return pl.BlockSpec(shape, lambda i: (0, 0),
                            pipeline_mode=pl.Buffered(1))
    except Exception:  # pragma: no cover - older JAX without pipeline_mode
        return pl.BlockSpec(shape, lambda i: (0, 0))


def prepare_params(w_up, w_gate, w_down, compute_dtype=jnp.bfloat16):
    """One-time weight prep: PyTorch [out,in] -> [in,out], pad to 128, cast.

    Call once at load time so the transposes / pads / casts are not
    re-materialized in HBM on every forward.
    """
    d_int, d_in = w_up.shape
    d_h = w_down.shape[0]
    d_in_p, d_int_p, d_h_p = (_round_up(d, 128) for d in (d_in, d_int, d_h))

    wu = jnp.zeros((d_in_p, d_int_p), compute_dtype)
    wu = wu.at[:d_in, :d_int].set(w_up.T.astype(compute_dtype))
    wg = jnp.zeros((d_int_p, d_int_p), compute_dtype)
    wg = wg.at[:d_int, :d_int].set(w_gate.T.astype(compute_dtype))
    wd = jnp.zeros((d_int_p, d_h_p), compute_dtype)
    wd = wd.at[:d_int, :d_h].set(w_down.T.astype(compute_dtype))
    return wu, wg, wd


@functools.partial(jax.jit, static_argnames=("hidden_size", "target_row_tile"))
def project_model_forward(x, wu, wg, wd, *, hidden_size, target_row_tile=256):
    """x: [..., input_size]; wu/wg/wd from prepare_params (padded [in,out])."""
    orig_shape = x.shape
    d_in = orig_shape[-1]
    d_in_p, d_int_p = wu.shape
    d_h_p = wd.shape[1]
    compute_dtype = wu.dtype
    out_dtype = x.dtype

    # Flatten leading dims into rows; pick a large row tile (MXU M dim) but
    # never larger than the (8-aligned) row count so tiny inputs stay cheap.
    x2 = x.reshape(-1, d_in)
    n_rows = x2.shape[0]
    row_tile = min(target_row_tile, _round_up(n_rows, 8))
    rows_p = _round_up(n_rows, row_tile)

    # Pad rows + features (lane-dense last dim) and cast to the MXU dtype.
    x2 = jnp.pad(x2.astype(compute_dtype),
                 ((0, rows_p - n_rows), (0, d_in_p - d_in)))

    grid = (rows_p // row_tile,)

    # Explicit VMEM budget: single-buffered resident weights + double-buffered
    # x/o tiles + f32 intermediates, plus margin.  Clamp to [16 MiB, 64 MiB]
    # so it is valid on every generation (v7x physical VMEM is 64 MiB per TC).
    bpe = jnp.dtype(compute_dtype).itemsize
    out_bpe = jnp.dtype(out_dtype).itemsize
    w_bytes = (d_in_p * d_int_p + d_int_p * d_int_p + d_int_p * d_h_p) * bpe
    x_bytes = 2 * row_tile * d_in_p * bpe
    o_bytes = 2 * row_tile * d_h_p * out_bpe
    acc_bytes = 2 * row_tile * d_int_p * 4
    vmem_limit = int(min(max(w_bytes + x_bytes + o_bytes + acc_bytes
                             + (4 << 20), 16 << 20), 64 << 20))

    flops = 2 * rows_p * (d_in_p * d_int_p + d_int_p * d_int_p
                          + d_int_p * d_h_p)
    transcendentals = 2 * rows_p * d_int_p  # two SiLUs (sigmoid) per row
    bytes_accessed = (rows_p * d_in_p * bpe + w_bytes
                      + rows_p * d_h_p * out_bpe)

    out = pl.pallas_call(
        mlp_kernel,
        out_shape=jax.ShapeDtypeStruct((rows_p, d_h_p), out_dtype),
        grid_spec=pltpu.PrefetchScalarGridSpec(
            num_scalar_prefetch=0,
            grid=grid,
            in_specs=[
                pl.BlockSpec((row_tile, d_in_p), lambda i: (i, 0)),
                _weight_spec((d_in_p, d_int_p)),
                _weight_spec((d_int_p, d_int_p)),
                _weight_spec((d_int_p, d_h_p)),
            ],
            out_specs=pl.BlockSpec((row_tile, d_h_p), lambda i: (i, 0)),
        ),
        compiler_params=pltpu.CompilerParams(
            dimension_semantics=("parallel",),  # row grid shards across TCs
            vmem_limit_bytes=vmem_limit,
        ),
        cost_estimate=pl.CostEstimate(
            flops=flops,
            transcendentals=transcendentals,
            bytes_accessed=bytes_accessed,
        ),
    )(x2, wu, wg, wd)

    out = out[:n_rows, :hidden_size]
    return out.reshape(*orig_shape[:-1], hidden_size)


def reference_forward(x, w_up, w_gate, w_down):
    h = jax.nn.silu(x @ w_up.T)
    g = jax.nn.silu(h @ w_gate.T)
    return g @ w_down.T


if __name__ == "__main__":
    batch, seq = 2, 8
    input_size = 32
    hidden_size = 32
    intermediate_size = 64

    key = jax.random.PRNGKey(0)
    kx, ku, kg, kd = jax.random.split(key, 4)

    x = jax.random.normal(kx, (batch, seq, input_size), dtype=jnp.float32)
    # PyTorch nn.Linear layout: [out_features, in_features], bias=False.
    w_up = jax.random.normal(ku, (intermediate_size, input_size),
                             dtype=jnp.float32) * 0.05
    w_gate = jax.random.normal(kg, (intermediate_size, intermediate_size),
                               dtype=jnp.float32) * 0.05
    w_down = jax.random.normal(kd, (hidden_size, intermediate_size),
                               dtype=jnp.float32) * 0.05

    ref = reference_forward(x, w_up, w_gate, w_down)

    # Exactness check: f32 operands, tight tolerance.
    wu32, wg32, wd32 = prepare_params(w_up, w_gate, w_down,
                                      compute_dtype=jnp.float32)
    out_f32 = jax.block_until_ready(
        project_model_forward(x, wu32, wg32, wd32, hidden_size=hidden_size))
    assert out_f32.shape == (batch, seq, hidden_size), out_f32.shape
    assert jnp.allclose(out_f32, ref, atol=1e-5, rtol=1e-5), (
        float(jnp.max(jnp.abs(out_f32 - ref))))

    # Performance configuration: bf16 operands into the MXU, f32 accumulate.
    wu16, wg16, wd16 = prepare_params(w_up, w_gate, w_down)
    out_bf16 = jax.block_until_ready(
        project_model_forward(x, wu16, wg16, wd16, hidden_size=hidden_size))
    assert out_bf16.shape == (batch, seq, hidden_size), out_bf16.shape
    assert jnp.allclose(out_bf16, ref, atol=5e-3, rtol=5e-2), (
        float(jnp.max(jnp.abs(out_bf16 - ref))))

    print("KERNEL_OK")
</pallas_src>

<mosaic_0001>
module attributes {stable_mosaic.version = 11 : i64} {
  func.func @mlp_kernel(%arg0: i32, %arg1: memref<16x128xf32, #tpu.memory_space<vmem>>, %arg2: memref<128x128xf32, #tpu.memory_space<vmem>>, %arg3: memref<128x128xf32, #tpu.memory_space<vmem>>, %arg4: memref<128x128xf32, #tpu.memory_space<vmem>>, %arg5: memref<16x128xf32, #tpu.memory_space<vmem>>) attributes {dimension_semantics = [#tpu.dimension_semantics<parallel>], iteration_bounds = array<i64: 1>, scalar_prefetch = 0 : i64, scratch_operands = 0 : i64, tpu.core_type = #tpu.core_type<tc>, window_params = [{transform_indices = @transform_0, window_bounds = array<i64: 16, 128>}, {pipeline_mode = #tpu.pipeline_mode<synchronous>, transform_indices = @transform_1, window_bounds = array<i64: 128, 128>}, {pipeline_mode = #tpu.pipeline_mode<synchronous>, transform_indices = @transform_2, window_bounds = array<i64: 128, 128>}, {pipeline_mode = #tpu.pipeline_mode<synchronous>, transform_indices = @transform_3, window_bounds = array<i64: 128, 128>}, {transform_indices = @transform_4, window_bounds = array<i64: 16, 128>}]} {
    %c0 = arith.constant 0 : index
    %c0_0 = arith.constant 0 : index
    %0 = vector.load %arg1[%c0, %c0_0] : memref<16x128xf32, #tpu.memory_space<vmem>>, vector<16x128xf32>
    %c0_1 = arith.constant 0 : index
    %c0_2 = arith.constant 0 : index
    %1 = vector.load %arg2[%c0_1, %c0_2] : memref<128x128xf32, #tpu.memory_space<vmem>>, vector<128x128xf32>
    %cst = arith.constant dense<0.000000e+00> : vector<16x128xf32>
    %2 = tpu.matmul %0, %1, %cst {dimension_numbers = #tpu.dot_dimension_numbers<[1], [0], [0], [1], [0, 0, 1, 1], [], []>} : vector<16x128xf32>, vector<128x128xf32>, vector<16x128xf32> -> vector<16x128xf32>
    %3 = arith.negf %2 : vector<16x128xf32>
    %4 = math.exp %3 : vector<16x128xf32>
    %cst_3 = arith.constant 1.000000e+00 : f32
    %5 = vector.broadcast %cst_3 : f32 to vector<16x128xf32>
    %6 = arith.addf %5, %4 : vector<16x128xf32>
    %7 = arith.divf %5, %6 : vector<16x128xf32>
    %8 = arith.mulf %2, %7 : vector<16x128xf32>
    %c0_4 = arith.constant 0 : index
    %c0_5 = arith.constant 0 : index
    %9 = vector.load %arg3[%c0_4, %c0_5] : memref<128x128xf32, #tpu.memory_space<vmem>>, vector<128x128xf32>
    %cst_6 = arith.constant dense<0.000000e+00> : vector<16x128xf32>
    %10 = tpu.matmul %8, %9, %cst_6 {dimension_numbers = #tpu.dot_dimension_numbers<[1], [0], [0], [1], [0, 0, 1, 1], [], []>} : vector<16x128xf32>, vector<128x128xf32>, vector<16x128xf32> -> vector<16x128xf32>
    %11 = arith.negf %10 : vector<16x128xf32>
    %12 = math.exp %11 : vector<16x128xf32>
    %cst_7 = arith.constant 1.000000e+00 : f32
    %13 = vector.broadcast %cst_7 : f32 to vector<16x128xf32>
    %14 = arith.addf %13, %12 : vector<16x128xf32>
    %15 = arith.divf %13, %14 : vector<16x128xf32>
    %16 = arith.mulf %10, %15 : vector<16x128xf32>
    %c0_8 = arith.constant 0 : index
    %c0_9 = arith.constant 0 : index
    %17 = vector.load %arg4[%c0_8, %c0_9] : memref<128x128xf32, #tpu.memory_space<vmem>>, vector<128x128xf32>
    %cst_10 = arith.constant dense<0.000000e+00> : vector<16x128xf32>
    %18 = tpu.matmul %16, %17, %cst_10 {dimension_numbers = #tpu.dot_dimension_numbers<[1], [0], [0], [1], [0, 0, 1, 1], [], []>} : vector<16x128xf32>, vector<128x128xf32>, vector<16x128xf32> -> vector<16x128xf32>
    %c0_11 = arith.constant 0 : index
    %c0_12 = arith.constant 0 : index
    %19 = vector.load %arg5[%c0_11, %c0_12] : memref<16x128xf32, #tpu.memory_space<vmem>>, vector<16x128xf32>
    tpu.vector_store %arg5[%c0_11, %c0_12], %18 {strides = array<i32>} : memref<16x128xf32, #tpu.memory_space<vmem>>, vector<16x128xf32>,
    return
  }
  func.func @transform_0(%arg0: i32) -> (i32, i32) {
    %c0_i32 = arith.constant 0 : i32
    %c0_i32_0 = arith.constant 0 : i32
    return %arg0, %c0_i32 : i32, i32
  }
  func.func @transform_1(%arg0: i32) -> (i32, i32) {
    %c0_i32 = arith.constant 0 : i32
    %c0_i32_0 = arith.constant 0 : i32
    %c0_i32_1 = arith.constant 0 : i32
    return %c0_i32, %c0_i32_0 : i32, i32
  }
  func.func @transform_2(%arg0: i32) -> (i32, i32) {
    %c0_i32 = arith.constant 0 : i32
    %c0_i32_0 = arith.constant 0 : i32
    %c0_i32_1 = arith.constant 0 : i32
    return %c0_i32, %c0_i32_0 : i32, i32
  }
  func.func @transform_3(%arg0: i32) -> (i32, i32) {
    %c0_i32 = arith.constant 0 : i32
    %c0_i32_0 = arith.constant 0 : i32
    %c0_i32_1 = arith.constant 0 : i32
    return %c0_i32, %c0_i32_0 : i32, i32
  }
  func.func @transform_4(%arg0: i32) -> (i32, i32) {
    %c0_i32 = arith.constant 0 : i32
    %c0_i32_0 = arith.constant 0 : i32
    return %arg0, %c0_i32 : i32, i32
  }
}

</mosaic_0001>

<llo_original>
// kernel: project_model_forward.1
$region0: #{project_model_forward.1}
  #allocation0 [shape = 'u32[]', space=smem, size = 0x4, offset = 0x4, fixed_abs, tag = 'smem constant byte address 0x4 - core index']
  #allocation1 [shape = 'u32[144,128]{1,0:T(1,128)}', space=vmem, size = 0x12000, scoped, tag = 'internal scratch']
  %s0 = inlined_call_operand.vmem [shape: f32[16,128], index: 0, kind: input, shape index: {}]
  %s1 = inlined_call_operand.hbm [shape: f32[128,128], index: 1, kind: input, shape index: {}]
  %s2 = inlined_call_operand.hbm [shape: f32[128,128], index: 2, kind: input, shape index: {}]
  %s3 = inlined_call_operand.hbm [shape: f32[128,128], index: 3, kind: input, shape index: {}]
  %s4 = inlined_call_operand.vmem [shape: f32[16,128], index: 4, kind: output, shape index: {}]
  %s5 = sld [smem:[#allocation0]]
  $region38: #{project_model_forward.1} parent=0
    _
  %s7 = ssub.s32 1, %s5
  %s8 = scalar_select 0, %s7, %s5
  $region1: #{project_model_forward.1} parent=0
    #allocation2 [shape = 'u8[65536]{0}', space=vmem, size = 0x10000, scoped, tag = 'input window, operand 1, single buffered']
    #allocation3 [shape = 's32[1]{0}', space=sflag, size = 0x4, scoped, tag = 'scoped memory for project_model_forward.1']
    #allocation4 [shape = 'u8[65536]{0}', space=vmem, size = 0x10000, scoped, tag = 'input window, operand 2, single buffered']
    #allocation5 [shape = 's32[1]{0}', space=sflag, size = 0x4, scoped, tag = 'scoped memory for project_model_forward.1']
    #allocation6 [shape = 'u8[65536]{0}', space=vmem, size = 0x10000, scoped, tag = 'input window, operand 3, single buffered']
    %9 = vsyncpa [#allocation3], 0
    %10 = vsyncpa [#allocation5], 0
    // Predicated region
    $region2: #{project_model_forward.1} parent=1 // pred_check
      _
    $region3: #{project_model_forward.1} parent=1 // pred_check_branch
      %12 = sbr.rel (0) target = $region5
    $region4: #{project_model_forward.1} parent=1 // pred_region
      _
    $region5: #{project_model_forward.1} parent=1 // pred_fallthru
      _
    // Predicated region
    $region6: #{project_model_forward.1} parent=1 // pred_check
      _
    $region7: #{project_model_forward.1} parent=1 // pred_check_branch
      %14 = sbr.rel (0) target = $region9
    $region8: #{project_model_forward.1} parent=1 // pred_region
      %s16 = ssub.s32 2048, 2048
      %17 = vsyncadd [#allocation3], %s16
      %s18 = sshll.u32 [#allocation2], 4
      %s19 = int_to_ptr.vmem [resolvable:$true] %s18
      %24 = dma.hbm_to_vmem [thread:$0]  %s1, 2048, %s19, [#allocation3], 128, 128, 8
    $region9: #{project_model_forward.1} parent=1 // pred_fallthru
      _
    // Predicated region
    $region10: #{project_model_forward.1} parent=1 // pred_check
      _
    $region11: #{project_model_forward.1} parent=1 // pred_check_branch
      %26 = sbr.rel (0) target = $region13
    $region12: #{project_model_forward.1} parent=1 // pred_region
      %s28 = ssub.s32 2048, 2048
      %29 = vsyncadd [#allocation5], %s28
      %s30 = sshll.u32 [#allocation4], 4
      %s31 = int_to_ptr.vmem [resolvable:$true] %s30
      %36 = dma.hbm_to_vmem [thread:$0]  %s2, 2048, %s31, [#allocation5], 128, 128, 8
    $region13: #{project_model_forward.1} parent=1 // pred_fallthru
      _
    // Predicated region
    $region14: #{project_model_forward.1} parent=1 // pred_check
      _
    $region15: #{project_model_forward.1} parent=1 // pred_check_branch
      %38 = sbr.rel (0) target = $region17
    $region16: #{project_model_forward.1} parent=1 // pred_region
      %s40 = ssub.s32 2048, 2048
      %41 = vsyncadd [#allocation5], %s40
      %s42 = sshll.u32 [#allocation6], 4
      %s43 = int_to_ptr.vmem [resolvable:$true] %s42
      %48 = dma.hbm_to_vmem [thread:$0]  %s3, 2048, %s43, [#allocation5], 128, 128, 8
    $region17: #{project_model_forward.1} parent=1 // pred_fallthru
      _
    // Predicated region
    $region18: #{project_model_forward.1} parent=1 // pred_check
      _
    $region19: #{project_model_forward.1} parent=1 // pred_check_branch
      %50 = sbr.rel (0) target = $region21
    $region20: #{project_model_forward.1} parent=1 // pred_region
      %51 = dma.done [#allocation3], 2048
    $region21: #{project_model_forward.1} parent=1 // pred_fallthru
      _
    // Predicated region
    $region22: #{project_model_forward.1} parent=1 // pred_check
      _
    $region23: #{project_model_forward.1} parent=1 // pred_check_branch
      %53 = sbr.rel (0) target = $region25
    $region24: #{project_model_forward.1} parent=1 // pred_region
      %54 = dma.done [#allocation5], 2048
    $region25: #{project_model_forward.1} parent=1 // pred_fallthru
      _
    // Predicated region
    $region26: #{project_model_forward.1} parent=1 // pred_check
      _
    $region27: #{project_model_forward.1} parent=1 // pred_check_branch
      %56 = sbr.rel (0) target = $region29
    $region28: #{project_model_forward.1} parent=1 // pred_region
      %57 = dma.done [#allocation5], 2048
    $region29: #{project_model_forward.1} parent=1 // pred_fallthru
      _
    %v58 = vld [vmem:[%s0] sm:$0xff]
    %v59 = vld [vmem:[%s0 + $0x8] sm:$0xff]
    %v60 = vld [vmem:[#allocation2] sm:$0xff]
    %v61 = vld [vmem:[#allocation2 + $0x8] sm:$0xff]
    %v62 = vld [vmem:[#allocation2 + $0x10] sm:$0xff]
    %v63 = vld [vmem:[#allocation2 + $0x18] sm:$0xff]
    %v64 = vld [vmem:[#allocation2 + $0x20] sm:$0xff]
    %v65 = vld [vmem:[#allocation2 + $0x28] sm:$0xff]
    %v66 = vld [vmem:[#allocation2 + $0x30] sm:$0xff]
    %v67 = vld [vmem:[#allocation2 + $0x38] sm:$0xff]
    %v68 = vld [vmem:[#allocation2 + $0x40] sm:$0xff]
    %v69 = vld [vmem:[#allocation2 + $0x48] sm:$0xff]
    %v70 = vld [vmem:[#allocation2 + $0x50] sm:$0xff]
    %v71 = vld [vmem:[#allocation2 + $0x58] sm:$0xff]
    %v72 = vld [vmem:[#allocation2 + $0x60] sm:$0xff]
    %v73 = vld [vmem:[#allocation2 + $0x68] sm:$0xff]
    %v74 = vld [vmem:[#allocation2 + $0x70] sm:$0xff]
    %v75 = vld [vmem:[#allocation2 + $0x78] sm:$0xff]
    %76 = vmatprep.subr.mxu0 0.0
    %77 = vmatpush1.msra.mxu0 %v60
    %78 = vmatprep.subr.mxu0 0.0
    %79 = vmatpush1.msra.mxu0 %v61
    %80 = vmatprep.subr.mxu0 0.0
    %81 = vmatpush1.msra.mxu0 %v62
    %82 = vmatprep.subr.mxu0 0.0
    %83 = vmatpush1.msra.mxu0 %v63
    %84 = vmatprep.subr.mxu0 0.0
    %85 = vmatpush1.msra.mxu0 %v64
    %86 = vmatprep.subr.mxu0 0.0
    %87 = vmatpush1.msra.mxu0 %v65
    %88 = vmatprep.subr.mxu0 0.0
    %89 = vmatpush1.msra.mxu0 %v66
    %90 = vmatprep.subr.mxu0 0.0
    %91 = vmatpush1.msra.mxu0 %v67
    %92 = vmatprep.subr.mxu0 0.0
    %93 = vmatpush1.msra.mxu0 %v68
    %94 = vmatprep.subr.mxu0 0.0
    %95 = vmatpush1.msra.mxu0 %v69
    %96 = vmatprep.subr.mxu0 0.0
    %97 = vmatpush1.msra.mxu0 %v70
    %98 = vmatprep.subr.mxu0 0.0
    %99 = vmatpush1.msra.mxu0 %v71
    %100 = vmatprep.subr.mxu0 0.0
    %101 = vmatpush1.msra.mxu0 %v72
    %102 = vmatprep.subr.mxu0 0.0
    %103 = vmatpush1.msra.mxu0 %v73
    %104 = vmatprep.subr.mxu0 0.0
    %105 = vmatpush1.msra.mxu0 %v74
    %106 = vmatprep.subr.mxu0 0.0
    %107 = vmatpush1.msra.mxu0 %v75
    %108 = vmatprep.subr.mxu0 0.0
    %109 = vmatpush1.msra.mxu0 0.0
    %110 = vmatprep.subr.mxu0 0.0
    %111 = vmatpush1.msra.mxu0 0.0
    %112 = vmatprep.subr.mxu0 0.0
    %113 = vmatpush1.msra.mxu0 0.0
    %114 = vmatprep.subr.mxu0 0.0
    %115 = vmatpush1.msra.mxu0 0.0
    %116 = vmatprep.subr.mxu0 0.0
    %117 = vmatpush1.msra.mxu0 0.0
    %118 = vmatprep.subr.mxu0 0.0
    %119 = vmatpush1.msra.mxu0 0.0
    %120 = vmatprep.subr.mxu0 0.0
    %121 = vmatpush1.msra.mxu0 0.0
    %122 = vmatprep.subr.mxu0 0.0
    %123 = vmatpush1.msra.mxu0 0.0
    %124 = vmatprep.subr.mxu0 0.0
    %125 = vmatpush1.msra.mxu0 0.0
    %126 = vmatprep.subr.mxu0 0.0
    %127 = vmatpush1.msra.mxu0 0.0
    %128 = vmatprep.subr.mxu0 0.0
    %129 = vmatpush1.msra.mxu0 0.0
    %130 = vmatprep.subr.mxu0 0.0
    %131 = vmatpush1.msra.mxu0 0.0
    %132 = vmatprep.subr.mxu0 0.0
    %133 = vmatpush1.msra.mxu0 0.0
    %134 = vmatprep.subr.mxu0 0.0
    %135 = vmatpush1.msra.mxu0 0.0
    %136 = vmatprep.subr.mxu0 0.0
    %137 = vmatpush1.msra.mxu0 0.0
    %138 = vmatprep.subr.mxu0 0.0
    %139 = vmatpush1.msra.mxu0 0.0
    %140 = vmatprep.mubr.f32.mxu0 0.0
    %141 = vmatmul.mubr.f32.gmra.mrb[0].mxu0 %v58
    %v142 = vpop.f32.mrb[0].mxu0
    %v143 = vadd.f32 0.0, %v142
    %v144 = vpop.f32.mrb[0].mxu0
    %145 = vmatprep.mubr.f32.mxu0 0.0
    %146 = vmatmul.mubr.f32.gmra.mrb[0].mxu0 %v59
    %v147 = vpop.f32.mrb[0].mxu0
    %v148 = vadd.f32 0.0, %v147
    %v149 = vpop.f32.mrb[0].mxu0
    %150 = vdwg.mxu0
    %v151 = vxor.u32 %v143, 2147483648
    %v152 = vxor.u32 %v148, 2147483648
    %v153 = vmul.f32 %v151, 1.442695
    %v154 = vpow.pop %v153
    %v155 = vmul.f32 %v152, 1.442695
    %v156 = vpow.pop %v155
    %v157 = vadd.f32 %v154, 1.0
    %v158 = vadd.f32 %v156, 1.0
    %v159 = vrcp.pop %v157
    %v160 = vmul.f32 1.0, %v159
    %v161 = vrcp.pop %v158
    %v162 = vmul.f32 1.0, %v161
    %v163 = vmul.f32 %v143, %v160
    %v164 = vmul.f32 %v148, %v162
    %v165 = vld [vmem:[#allocation4] sm:$0xff]
    %v166 = vld [vmem:[#allocation4 + $0x8] sm:$0xff]
    %v167 = vld [vmem:[#allocation4 + $0x10] sm:$0xff]
    %v168 = vld [vmem:[#allocation4 + $0x18] sm:$0xff]
    %v169 = vld [vmem:[#allocation4 + $0x20] sm:$0xff]
    %v170 = vld [vmem:[#allocation4 + $0x28] sm:$0xff]
    %v171 = vld [vmem:[#allocation4 + $0x30] sm:$0xff]
    %v172 = vld [vmem:[#allocation4 + $0x38] sm:$0xff]
    %v173 = vld [vmem:[#allocation4 + $0x40] sm:$0xff]
    %v174 = vld [vmem:[#allocation4 + $0x48] sm:$0xff]
    %v175 = vld [vmem:[#allocation4 + $0x50] sm:$0xff]
    %v176 = vld [vmem:[#allocation4 + $0x58] sm:$0xff]
    %v177 = vld [vmem:[#allocation4 + $0x60] sm:$0xff]
    %v178 = vld [vmem:[#allocation4 + $0x68] sm:$0xff]
    %v179 = vld [vmem:[#allocation4 + $0x70] sm:$0xff]
    %v180 = vld [vmem:[#allocation4 + $0x78] sm:$0xff]
    %181 = vmatprep.subr.mxu0 0.0
    %182 = vmatpush1.msra.mxu0 %v165
    %183 = vmatprep.subr.mxu0 0.0
    %184 = vmatpush1.msra.mxu0 %v166
    %185 = vmatprep.subr.mxu0 0.0
    %186 = vmatpush1.msra.mxu0 %v167
    %187 = vmatprep.subr.mxu0 0.0
    %188 = vmatpush1.msra.mxu0 %v168
    %189 = vmatprep.subr.mxu0 0.0
    %190 = vmatpush1.msra.mxu0 %v169
    %191 = vmatprep.subr.mxu0 0.0
    %192 = vmatpush1.msra.mxu0 %v170
    %193 = vmatprep.subr.mxu0 0.0
    %194 = vmatpush1.msra.mxu0 %v171
    %195 = vmatprep.subr.mxu0 0.0
    %196 = vmatpush1.msra.mxu0 %v172
    %197 = vmatprep.subr.mxu0 0.0
    %198 = vmatpush1.msra.mxu0 %v173
    %199 = vmatprep.subr.mxu0 0.0
    %200 = vmatpush1.msra.mxu0 %v174
    %201 = vmatprep.subr.mxu0 0.0
    %202 = vmatpush1.msra.mxu0 %v175
    %203 = vmatprep.subr.mxu0 0.0
    %204 = vmatpush1.msra.mxu0 %v176
    %205 = vmatprep.subr.mxu0 0.0
    %206 = vmatpush1.msra.mxu0 %v177
    %207 = vmatprep.subr.mxu0 0.0
    %208 = vmatpush1.msra.mxu0 %v178
    %209 = vmatprep.subr.mxu0 0.0
    %210 = vmatpush1.msra.mxu0 %v179
    %211 = vmatprep.subr.mxu0 0.0
    %212 = vmatpush1.msra.mxu0 %v180
    %213 = vmatprep.subr.mxu0 0.0
    %214 = vmatpush1.msra.mxu0 0.0
    %215 = vmatprep.subr.mxu0 0.0
    %216 = vmatpush1.msra.mxu0 0.0
    %217 = vmatprep.subr.mxu0 0.0
    %218 = vmatpush1.msra.mxu0 0.0
    %219 = vmatprep.subr.mxu0 0.0
    %220 = vmatpush1.msra.mxu0 0.0
    %221 = vmatprep.subr.mxu0 0.0
    %222 = vmatpush1.msra.mxu0 0.0
    %223 = vmatprep.subr.mxu0 0.0
    %224 = vmatpush1.msra.mxu0 0.0
    %225 = vmatprep.subr.mxu0 0.0
    %226 = vmatpush1.msra.mxu0 0.0
    %227 = vmatprep.subr.mxu0 0.0
    %228 = vmatpush1.msra.mxu0 0.0
    %229 = vmatprep.subr.mxu0 0.0
    %230 = vmatpush1.msra.mxu0 0.0
    %231 = vmatprep.subr.mxu0 0.0
    %232 = vmatpush1.msra.mxu0 0.0
    %233 = vmatprep.subr.mxu0 0.0
    %234 = vmatpush1.msra.mxu0 0.0
    %235 = vmatprep.subr.mxu0 0.0
    %236 = vmatpush1.msra.mxu0 0.0
    %237 = vmatprep.subr.mxu0 0.0
    %238 = vmatpush1.msra.mxu0 0.0
    %239 = vmatprep.subr.mxu0 0.0
    %240 = vmatpush1.msra.mxu0 0.0
    %241 = vmatprep.subr.mxu0 0.0
    %242 = vmatpush1.msra.mxu0 0.0
    %243 = vmatprep.subr.mxu0 0.0
    %244 = vmatpush1.msra.mxu0 0.0
    %245 = vmatprep.mubr.f32.mxu0 0.0
    %246 = vmatmul.mubr.f32.gmra.mrb[0].mxu0 %v163
    %v247 = vpop.f32.mrb[0].mxu0
    %v248 = vadd.f32 0.0, %v247
    %v249 = vpop.f32.mrb[0].mxu0
    %250 = vmatprep.mubr.f32.mxu0 0.0
    %251 = vmatmul.mubr.f32.gmra.mrb[0].mxu0 %v164
    %v252 = vpop.f32.mrb[0].mxu0
    %v253 = vadd.f32 0.0, %v252
    %v254 = vpop.f32.mrb[0].mxu0
    %255 = vdwg.mxu0
    %v256 = vxor.u32 %v248, 2147483648
    %v257 = vxor.u32 %v253, 2147483648
    %v258 = vmul.f32 %v256, 1.442695
    %v259 = vpow.pop %v258
    %v260 = vmul.f32 %v257, 1.442695
    %v261 = vpow.pop %v260
    %v262 = vadd.f32 %v259, 1.0
    %v263 = vadd.f32 %v261, 1.0
    %v264 = vrcp.pop %v262
    %v265 = vmul.f32 1.0, %v264
    %v266 = vrcp.pop %v263
    %v267 = vmul.f32 1.0, %v266
    %v268 = vmul.f32 %v248, %v265
    %v269 = vmul.f32 %v253, %v267
    %v270 = vld [vmem:[#allocation6] sm:$0xff]
    %v271 = vld [vmem:[#allocation6 + $0x8] sm:$0xff]
    %v272 = vld [vmem:[#allocation6 + $0x10] sm:$0xff]
    %v273 = vld [vmem:[#allocation6 + $0x18] sm:$0xff]
    %v274 = vld [vmem:[#allocation6 + $0x20] sm:$0xff]
    %v275 = vld [vmem:[#allocation6 + $0x28] sm:$0xff]
    %v276 = vld [vmem:[#allocation6 + $0x30] sm:$0xff]
    %v277 = vld [vmem:[#allocation6 + $0x38] sm:$0xff]
    %v278 = vld [vmem:[#allocation6 + $0x40] sm:$0xff]
    %v279 = vld [vmem:[#allocation6 + $0x48] sm:$0xff]
    %v280 = vld [vmem:[#allocation6 + $0x50] sm:$0xff]
    %v281 = vld [vmem:[#allocation6 + $0x58] sm:$0xff]
    %v282 = vld [vmem:[#allocation6 + $0x60] sm:$0xff]
    %v283 = vld [vmem:[#allocation6 + $0x68] sm:$0xff]
    %v284 = vld [vmem:[#allocation6 + $0x70] sm:$0xff]
    %v285 = vld [vmem:[#allocation6 + $0x78] sm:$0xff]
    %286 = vmatprep.subr.mxu0 0.0
    %287 = vmatpush1.msra.mxu0 %v270
    %288 = vmatprep.subr.mxu0 0.0
    %289 = vmatpush1.msra.mxu0 %v271
    %290 = vmatprep.subr.mxu0 0.0
    %291 = vmatpush1.msra.mxu0 %v272
    %292 = vmatprep.subr.mxu0 0.0
    %293 = vmatpush1.msra.mxu0 %v273
    %294 = vmatprep.subr.mxu0 0.0
    %295 = vmatpush1.msra.mxu0 %v274
    %296 = vmatprep.subr.mxu0 0.0
    %297 = vmatpush1.msra.mxu0 %v275
    %298 = vmatprep.subr.mxu0 0.0
    %299 = vmatpush1.msra.mxu0 %v276
    %300 = vmatprep.subr.mxu0 0.0
    %301 = vmatpush1.msra.mxu0 %v277
    %302 = vmatprep.subr.mxu0 0.0
    %303 = vmatpush1.msra.mxu0 %v278
    %304 = vmatprep.subr.mxu0 0.0
    %305 = vmatpush1.msra.mxu0 %v279
    %306 = vmatprep.subr.mxu0 0.0
    %307 = vmatpush1.msra.mxu0 %v280
    %308 = vmatprep.subr.mxu0 0.0
    %309 = vmatpush1.msra.mxu0 %v281
    %310 = vmatprep.subr.mxu0 0.0
    %311 = vmatpush1.msra.mxu0 %v282
    %312 = vmatprep.subr.mxu0 0.0
    %313 = vmatpush1.msra.mxu0 %v283
    %314 = vmatprep.subr.mxu0 0.0
    %315 = vmatpush1.msra.mxu0 %v284
    %316 = vmatprep.subr.mxu0 0.0
    %317 = vmatpush1.msra.mxu0 %v285
    %318 = vmatprep.subr.mxu0 0.0
    %319 = vmatpush1.msra.mxu0 0.0
    %320 = vmatprep.subr.mxu0 0.0
    %321 = vmatpush1.msra.mxu0 0.0
    %322 = vmatprep.subr.mxu0 0.0
    %323 = vmatpush1.msra.mxu0 0.0
    %324 = vmatprep.subr.mxu0 0.0
    %325 = vmatpush1.msra.mxu0 0.0
    %326 = vmatprep.subr.mxu0 0.0
    %327 = vmatpush1.msra.mxu0 0.0
    %328 = vmatprep.subr.mxu0 0.0
    %329 = vmatpush1.msra.mxu0 0.0
    %330 = vmatprep.subr.mxu0 0.0
    %331 = vmatpush1.msra.mxu0 0.0
    %332 = vmatprep.subr.mxu0 0.0
    %333 = vmatpush1.msra.mxu0 0.0
    %334 = vmatprep.subr.mxu0 0.0
    %335 = vmatpush1.msra.mxu0 0.0
    %336 = vmatprep.subr.mxu0 0.0
    %337 = vmatpush1.msra.mxu0 0.0
    %338 = vmatprep.subr.mxu0 0.0
    %339 = vmatpush1.msra.mxu0 0.0
    %340 = vmatprep.subr.mxu0 0.0
    %341 = vmatpush1.msra.mxu0 0.0
    %342 = vmatprep.subr.mxu0 0.0
    %343 = vmatpush1.msra.mxu0 0.0
    %344 = vmatprep.subr.mxu0 0.0
    %345 = vmatpush1.msra.mxu0 0.0
    %346 = vmatprep.subr.mxu0 0.0
    %347 = vmatpush1.msra.mxu0 0.0
    %348 = vmatprep.subr.mxu0 0.0
    %349 = vmatpush1.msra.mxu0 0.0
    %350 = vmatprep.mubr.f32.mxu0 0.0
    %351 = vmatmul.mubr.f32.gmra.mrb[0].mxu0 %v268
    %v352 = vpop.f32.mrb[0].mxu0
    %v353 = vadd.f32 0.0, %v352
    %v354 = vpop.f32.mrb[0].mxu0
    %355 = vmatprep.mubr.f32.mxu0 0.0
    %356 = vmatmul.mubr.f32.gmra.mrb[0].mxu0 %v269
    %v357 = vpop.f32.mrb[0].mxu0
    %v358 = vadd.f32 0.0, %v357
    %v359 = vpop.f32.mrb[0].mxu0
    %360 = vdwg.mxu0
    %361 = vst [vmem:[%s4] sm:$0xff] %v353
    %362 = vst [vmem:[%s4 + $0x8] sm:$0xff] %v358
    // Predicated region
    $region30: #{project_model_forward.1} parent=1 // pred_check
      _
    $region31: #{project_model_forward.1} parent=1 // pred_check_branch
      %364 = sbr.rel (0) target = $region33
    $region32: #{project_model_forward.1} parent=1 // pred_region
      _
    $region33: #{project_model_forward.1} parent=1 // pred_fallthru
      _
    // Predicated region
    $region34: #{project_model_forward.1} parent=1 // pred_check
      _
    $region35: #{project_model_forward.1} parent=1 // pred_check_branch
      %366 = sbr.rel (0) target = $region37
    $region36: #{project_model_forward.1} parent=1 // pred_region
      _
    $region37: #{project_model_forward.1} parent=1 // pred_fallthru
      _
    %367 = vsyncpa [#allocation3], 1
    %368 = vsyncpa [#allocation5], 1

</llo_original>
